<compile_context>
chip_gen: v7x
topology: tpu7x:2x2x1
jax: 0.10.0
libtpu: 0.0.40
codegen_flags: <defaults>
</compile_context>

<pallas_src>
import functools

import jax
import jax.numpy as jnp
import numpy as np
from jax.experimental import pallas as pl
from jax.experimental.pallas import tpu as pltpu


def _sa_kernel(x_ref, prm_ref, o_ref):
    """One (TB, C/2, N) slab: every channel of one channel-shuffle slot s.

    x_ref, o_ref : (TB, CH, N)  CH = C/2; row r is input channel s*CH + r and lands at
                                output channel 2*r + s (the channel shuffle).
    prm_ref      : (1, CH, 3)   folded per-row params: [A_or_0, cw_or_0, bias].
    """
    n = x_ref.shape[-1]
    inv_n = jnp.float32(1.0 / n)

    x = x_ref[...].astype(jnp.float32)                       # (TB, CH, N)
    prm = prm_ref[...]                                       # (1, CH, 3)
    a_gn = prm[:, :, 0:1]   # sweight*gn_w  (GroupNorm rows) or 0 (avg-pool rows)
    c_cw = prm[:, :, 1:2]   # cweight       (avg-pool rows)  or 0 (GroupNorm rows)
    bias = prm[:, :, 2:3]   # sweight*gn_b + sbias           or cbias

    mean = jnp.sum(x, axis=-1, keepdims=True) * inv_n        # (TB, CH, 1)
    cent = x - mean
    var = jnp.sum(cent * cent, axis=-1, keepdims=True) * inv_n
    rst = jax.lax.rsqrt(var + jnp.float32(1e-5))             # per-row, EUP

    # gate argument:  GroupNorm rows: A*(x-mean)*rst + bias = alpha*x + delta
    #                 avg-pool rows : cweight*mean + cbias  =   0 *x + delta
    alpha = a_gn * rst                                       # (TB, CH, 1)
    delta = (c_cw - alpha) * mean + bias                     # (TB, CH, 1)
    arg = alpha * x + delta                                  # (TB, CH, N)
    gate = 0.5 * jnp.tanh(0.5 * arg) + 0.5                   # sigmoid, one transcendental
    o_ref[...] = (x * gate).astype(o_ref.dtype)


def _vmem_budget_bytes():
    cap = 128 << 20
    try:
        info = pltpu.get_tpu_info()
        cap = int(getattr(info, "vmem_capacity_bytes", cap) or cap)
    except Exception:
        pass
    # ~3/4 of physical, never more than 64 MiB: 64 MiB on v5e/v6e, 48 MiB on v7x.
    return int(min(cap * 3 // 4, 64 << 20))


def _pick_batch_tile(batch, per_batch_bytes, target_bytes):
    tb = 1
    for cand in range(1, batch + 1):
        if batch % cand == 0 and cand * per_batch_bytes <= target_bytes:
            tb = cand
    return tb


@functools.partial(jax.jit, static_argnames=("groups",))
def sa_layer_forward(x, params, groups=8):
    """x: (B, C, H, W); params: cweight/cbias/sweight/sbias/gn_weight/gn_bias."""
    b, c, h, w = x.shape
    cp = c // (2 * groups)
    if cp * 2 * groups != c:
        raise ValueError("channel must be divisible by 2*groups")
    n = h * w
    chalf = groups * cp                       # C // 2 channels per shuffle slot

    if n % 128 != 0 or chalf % 8 != 0 or groups % 2 != 0:
        # TODO(synk): masked / lane-padded fallback path for these shapes.
        raise NotImplementedError(
            "pallas sa_layer requires H*W % 128 == 0, even groups and (C//2) % 8 == 0")

    x3 = x.reshape(b, c, n)                   # free reshape under jit (no HBM copy)

    # ---- fold all six per-channel params into one tiny (1, C/2, 3) operand ----------
    f32 = jnp.float32
    cw = params["cweight"].reshape(cp).astype(f32)
    cb = params["cbias"].reshape(cp).astype(f32)
    sw = params["sweight"].reshape(cp).astype(f32)
    sb = params["sbias"].reshape(cp).astype(f32)
    gw = params["gn_weight"].reshape(cp).astype(f32)
    gb = params["gn_bias"].reshape(cp).astype(f32)
    a_full = sw * gw                          # folded GroupNorm scale
    b_full = sw * gb + sb                     # folded GroupNorm bias

    ridx = np.arange(chalf)
    j = ridx % cp                             # channel-within-group index for each row
    is_gn = ((ridx // cp) % 2).astype(bool)   # True -> GroupNorm branch, False -> pool
    prm = jnp.stack(
        [jnp.where(is_gn, a_full[j], 0.0),
         jnp.where(is_gn, 0.0, cw[j]),
         jnp.where(is_gn, b_full[j], cb[j])],
        axis=-1).reshape(1, chalf, 3)

    # ---- tiling / VMEM budget ---------------------------------------------------------
    itemsize = x.dtype.itemsize
    vmem_limit = _vmem_budget_bytes()
    block_target = vmem_limit // 8            # room for double-buffered in + out blocks
    tb = _pick_batch_tile(b, chalf * n * itemsize, block_target)
    grid = (b // tb, 2)                       # (batch tiles, shuffle slot s) — >= 2 steps

    elems = b * c * n
    cost = pl.CostEstimate(
        flops=int(10 * elems),
        transcendentals=int(elems),
        bytes_accessed=int(2 * elems * itemsize + chalf * 3 * 4))

    out3 = pl.pallas_call(
        _sa_kernel,
        out_shape=jax.ShapeDtypeStruct((b, chalf, 2 * n), x.dtype),
        grid=grid,
        in_specs=[
            # channel split folded into the input BlockSpec: slot s reads channels
            # [s*C/2, (s+1)*C/2) straight out of the untouched input.
            pl.BlockSpec((tb, chalf, n), lambda bt, s: (bt, s, 0)),
            pl.BlockSpec((1, chalf, 3), lambda bt, s: (0, 0, 0)),
        ],
        # concat + channel_shuffle folded into the output BlockSpec: slot s writes lane
        # block [s*n, (s+1)*n) of row m; reshape to (B, C, H, W) afterwards is free.
        out_specs=pl.BlockSpec((tb, chalf, n), lambda bt, s: (bt, 0, s)),
        compiler_params=pltpu.CompilerParams(
            dimension_semantics=("parallel", "parallel"),
            vmem_limit_bytes=int(vmem_limit)),
        cost_estimate=cost,
    )(x3, prm)

    # (B, C/2, 2, N) row-major == channel-shuffled (B, C, H, W): contiguous, free.
    return out3.reshape(b, c, h, w)


def sa_layer_reference(x, params, groups=8):
    """Pure-JAX reference mirroring the PyTorch forward exactly."""
    b, c, h, w = x.shape
    cp = c // (2 * groups)
    xr = x.reshape(b * groups, 2 * cp, h, w)
    x0, x1 = xr[:, :cp], xr[:, cp:]

    xn = jnp.mean(x0, axis=(2, 3), keepdims=True)
    xn = params["cweight"] * xn + params["cbias"]
    xn = x0 * jax.nn.sigmoid(xn)

    mean = jnp.mean(x1, axis=(2, 3), keepdims=True)
    var = jnp.mean(jnp.square(x1 - mean), axis=(2, 3), keepdims=True)
    xs = (x1 - mean) / jnp.sqrt(var + 1e-5)
    xs = xs * params["gn_weight"].reshape(1, cp, 1, 1) + params["gn_bias"].reshape(1, cp, 1, 1)
    xs = params["sweight"] * xs + params["sbias"]
    xs = x1 * jax.nn.sigmoid(xs)

    out = jnp.concatenate([xn, xs], axis=1).reshape(b, c, h, w)
    out = out.reshape(b, 2, c // 2, h, w).transpose(0, 2, 1, 3, 4).reshape(b, c, h, w)
    return out


if __name__ == "__main__":
    key = jax.random.PRNGKey(0)
    B, C, H, W = 2, 32, 16, 16        # channel must be divisible by 2*groups
    groups = 8
    cp = C // (2 * groups)

    kx, k1, k2, k3, k4, k5, k6 = jax.random.split(key, 7)
    x = jax.random.normal(kx, (B, C, H, W), dtype=jnp.float32)

    # Parameter init exactly as the module's __init__.
    params = dict(
        cweight=jnp.zeros((1, cp, 1, 1), jnp.float32),
        cbias=jnp.ones((1, cp, 1, 1), jnp.float32),
        sweight=jnp.zeros((1, cp, 1, 1), jnp.float32),
        sbias=jnp.ones((1, cp, 1, 1), jnp.float32),
        gn_weight=jnp.ones((cp,), jnp.float32),   # GroupNorm affine defaults
        gn_bias=jnp.zeros((cp,), jnp.float32),
    )

    out = jax.block_until_ready(sa_layer_forward(x, params, groups=groups))
    ref = sa_layer_reference(x, params, groups)
    np.testing.assert_allclose(np.asarray(out), np.asarray(ref), rtol=1e-5, atol=1e-5)

    # Non-trivial parameters so every affine/gate term is actually exercised.
    params_nz = dict(
        cweight=0.5 * jax.random.normal(k1, (1, cp, 1, 1), jnp.float32),
        cbias=0.5 * jax.random.normal(k2, (1, cp, 1, 1), jnp.float32),
        sweight=0.5 * jax.random.normal(k3, (1, cp, 1, 1), jnp.float32),
        sbias=0.5 * jax.random.normal(k4, (1, cp, 1, 1), jnp.float32),
        gn_weight=1.0 + 0.5 * jax.random.normal(k5, (cp,), jnp.float32),
        gn_bias=0.5 * jax.random.normal(k6, (cp,), jnp.float32),
    )
    out_nz = jax.block_until_ready(sa_layer_forward(x, params_nz, groups=groups))
    ref_nz = sa_layer_reference(x, params_nz, groups)
    np.testing.assert_allclose(np.asarray(out_nz), np.asarray(ref_nz), rtol=1e-4, atol=1e-5)

    print("KERNEL_OK")
</pallas_src>

<mosaic_0001>
module attributes {stable_mosaic.version = 11 : i64} {
  func.func @_sa_kernel(%arg0: i32, %arg1: i32, %arg2: memref<2x16x256xf32, #tpu.memory_space<vmem>>, %arg3: memref<1x16x3xf32, #tpu.memory_space<vmem>>, %arg4: memref<2x16x256xf32, #tpu.memory_space<vmem>>) attributes {dimension_semantics = [#tpu.dimension_semantics<parallel>, #tpu.dimension_semantics<parallel>], iteration_bounds = array<i64: 1, 2>, scalar_prefetch = 0 : i64, scratch_operands = 0 : i64, tpu.core_type = #tpu.core_type<tc>, window_params = [{transform_indices = @transform_0, window_bounds = array<i64: 2, 16, 256>}, {pipeline_mode = #tpu.pipeline_mode<synchronous>, transform_indices = @transform_1, window_bounds = array<i64: 1, 16, 3>}, {transform_indices = @transform_2, window_bounds = array<i64: 2, 16, 256>}]} {
    %c0 = arith.constant 0 : index
    %c0_0 = arith.constant 0 : index
    %c0_1 = arith.constant 0 : index
    %0 = vector.load %arg2[%c0, %c0_0, %c0_1] : memref<2x16x256xf32, #tpu.memory_space<vmem>>, vector<2x16x256xf32>
    %c0_2 = arith.constant 0 : index
    %c0_3 = arith.constant 0 : index
    %c0_4 = arith.constant 0 : index
    %1 = vector.load %arg3[%c0_2, %c0_3, %c0_4] : memref<1x16x3xf32, #tpu.memory_space<vmem>>, vector<1x16x3xf32>
    %2 = vector.extract_strided_slice %1 {offsets = [0, 0, 0], sizes = [1, 16, 1], strides = [1, 1, 1]} : vector<1x16x3xf32> to vector<1x16x1xf32>
    %3 = vector.extract_strided_slice %1 {offsets = [0, 0, 1], sizes = [1, 16, 1], strides = [1, 1, 1]} : vector<1x16x3xf32> to vector<1x16x1xf32>
    %4 = vector.extract_strided_slice %1 {offsets = [0, 0, 2], sizes = [1, 16, 1], strides = [1, 1, 1]} : vector<1x16x3xf32> to vector<1x16x1xf32>
    %cst = arith.constant dense<0.000000e+00> : vector<2x16xf32>
    %5 = vector.multi_reduction <add>, %0, %cst [2] : vector<2x16x256xf32> to vector<2x16xf32>
    %6 = vector.shape_cast %5 : vector<2x16xf32> to vector<2x16x1xf32>
    %cst_5 = arith.constant 3.906250e-03 : f32
    %7 = vector.broadcast %cst_5 : f32 to vector<2x16x1xf32>
    %8 = arith.mulf %6, %7 : vector<2x16x1xf32>
    %9 = vector.broadcast %8 : vector<2x16x1xf32> to vector<2x16x256xf32>
    %10 = arith.subf %0, %9 : vector<2x16x256xf32>
    %11 = arith.mulf %10, %10 : vector<2x16x256xf32>
    %cst_6 = arith.constant dense<0.000000e+00> : vector<2x16xf32>
    %12 = vector.multi_reduction <add>, %11, %cst_6 [2] : vector<2x16x256xf32> to vector<2x16xf32>
    %13 = vector.shape_cast %12 : vector<2x16xf32> to vector<2x16x1xf32>
    %cst_7 = arith.constant 3.906250e-03 : f32
    %14 = vector.broadcast %cst_7 : f32 to vector<2x16x1xf32>
    %15 = arith.mulf %13, %14 : vector<2x16x1xf32>
    %cst_8 = arith.constant 9.99999974E-6 : f32
    %16 = vector.broadcast %cst_8 : f32 to vector<2x16x1xf32>
    %17 = arith.addf %15, %16 : vector<2x16x1xf32>
    %18 = math.rsqrt %17 : vector<2x16x1xf32>
    %19 = vector.broadcast %2 : vector<1x16x1xf32> to vector<2x16x1xf32>
    %20 = arith.mulf %19, %18 : vector<2x16x1xf32>
    %21 = vector.broadcast %3 : vector<1x16x1xf32> to vector<2x16x1xf32>
    %22 = arith.subf %21, %20 : vector<2x16x1xf32>
    %23 = arith.mulf %22, %8 : vector<2x16x1xf32>
    %24 = vector.broadcast %4 : vector<1x16x1xf32> to vector<2x16x1xf32>
    %25 = arith.addf %23, %24 : vector<2x16x1xf32>
    %26 = vector.broadcast %20 : vector<2x16x1xf32> to vector<2x16x256xf32>
    %27 = arith.mulf %26, %0 : vector<2x16x256xf32>
    %28 = vector.broadcast %25 : vector<2x16x1xf32> to vector<2x16x256xf32>
    %29 = arith.addf %27, %28 : vector<2x16x256xf32>
    %cst_9 = arith.constant 5.000000e-01 : f32
    %30 = vector.broadcast %cst_9 : f32 to vector<2x16x256xf32>
    %31 = arith.mulf %30, %29 : vector<2x16x256xf32>
    %32 = math.tanh %31 : vector<2x16x256xf32>
    %cst_10 = arith.constant 5.000000e-01 : f32
    %33 = vector.broadcast %cst_10 : f32 to vector<2x16x256xf32>
    %34 = arith.mulf %33, %32 : vector<2x16x256xf32>
    %cst_11 = arith.constant 5.000000e-01 : f32
    %35 = vector.broadcast %cst_11 : f32 to vector<2x16x256xf32>
    %36 = arith.addf %34, %35 : vector<2x16x256xf32>
    %37 = arith.mulf %0, %36 : vector<2x16x256xf32>
    %c0_12 = arith.constant 0 : index
    %c0_13 = arith.constant 0 : index
    %c0_14 = arith.constant 0 : index
    %38 = vector.load %arg4[%c0_12, %c0_13, %c0_14] : memref<2x16x256xf32, #tpu.memory_space<vmem>>, vector<2x16x256xf32>
    tpu.vector_store %arg4[%c0_12, %c0_13, %c0_14], %37 {strides = array<i32>} : memref<2x16x256xf32, #tpu.memory_space<vmem>>, vector<2x16x256xf32>,
    return
  }
  func.func @transform_0(%arg0: i32, %arg1: i32) -> (i32, i32, i32) {
    %c0_i32 = arith.constant 0 : i32
    %c0_i32_0 = arith.constant 0 : i32
    return %arg0, %arg1, %c0_i32 : i32, i32, i32
  }
  func.func @transform_1(%arg0: i32, %arg1: i32) -> (i32, i32, i32) {
    %c0_i32 = arith.constant 0 : i32
    %c0_i32_0 = arith.constant 0 : i32
    %c0_i32_1 = arith.constant 0 : i32
    %c0_i32_2 = arith.constant 0 : i32
    return %c0_i32, %c0_i32_0, %c0_i32_1 : i32, i32, i32
  }
  func.func @transform_2(%arg0: i32, %arg1: i32) -> (i32, i32, i32) {
    %c0_i32 = arith.constant 0 : i32
    %c0_i32_0 = arith.constant 0 : i32
    return %arg0, %c0_i32, %arg1 : i32, i32, i32
  }
}

</mosaic_0001>

<llo_original>
// kernel: sa_layer_forward.1
$region0: #{sa_layer_forward.1}
  #allocation0 [shape = 'u32[]', space=smem, size = 0x4, offset = 0x4, fixed_abs, tag = 'smem constant byte address 0x4 - core index']
  #allocation1 [shape = 'u32[144,128]{1,0:T(1,128)}', space=vmem, size = 0x12000, scoped, tag = 'internal scratch']
  #allocation8 [shape = 's32[]', space=sflag, size = 0x4, offset = 0, fixed_abs, tag = 'sflag constant byte address 0x0 - dummy sync flag']
  %s0 = inlined_call_operand.hbm [shape: f32[2,32,256], index: 0, kind: input, shape index: {}]
  %s1 = inlined_call_operand.hbm [shape: f32[1,16,3], index: 1, kind: input, shape index: {}]
  %s2 = inlined_call_operand.hbm [shape: f32[2,16,512], index: 2, kind: output, shape index: {}]
  %s3 = sld [smem:[#allocation0]]
  $region49: #{sa_layer_forward.1} parent=0
    _
  %s5 = ssub.s32 1, %s3
  %s6 = scalar_select 0, %s5, %s3
  $region1: #{sa_layer_forward.1} parent=0
    #allocation2 [shape = 'u8[65536]{0}', space=vmem, size = 0x10000, scoped, tag = 'input window, operand 0']
    #allocation3 [shape = 's32[2]{0}', space=sflag, size = 0x8, scoped, tag = 'scoped memory for sa_layer_forward.1']
    #allocation4 [shape = 's32[2]{0}', space=sflag, size = 0x8, scoped, tag = 'scoped memory for sa_layer_forward.1']
    #allocation5 [shape = 'u8[8192]{0}', space=vmem, size = 0x2000, scoped, tag = 'input window, operand 1, single buffered']
    #allocation6 [shape = 's32[1]{0}', space=sflag, size = 0x4, scoped, tag = 'scoped memory for sa_layer_forward.1']
    #allocation7 [shape = 'u8[65536]{0}', space=vmem, size = 0x10000, scoped, tag = 'output window, operand 0']
    %7 = vsyncpa [#allocation3], 0
    %s8 = scalar_lea.sflag [#allocation3], 1
    %9 = vsyncpa %s8, 0
    %10 = vsyncpa [#allocation6], 0
    %11 = vsyncpa [#allocation4], 0
    %s12 = scalar_lea.sflag [#allocation4], 1
    %13 = vsyncpa %s12, 0
    loop: start=0, step=1, limit=4
    $region2: #{sa_layer_forward.1} parent=1 // loop_pre_header
      _
    $region3: #{sa_layer_forward.1} parent=1 // loop_header
      %s15 = sphi 0, %s19
      %p16 = scmp.ge.s32.totalorder %s15, 4
      %s22 = sphi 0, %s34
      %s23 = sphi 0, %s30
      %s24 = sphi 0, %s22
      %s25 = sphi 0, %s23
      %s26 = sphi 0, %s24
      %s27 = sphi 0, %s25
      %s39 = sphi 0, %s41
      %s42 = sphi 0, %s39
      %s43 = sphi 0, %s42
      %s59 = sphi 0, %s43
      %s63 = sphi 0, %s63
      %s65 = sphi 0, %s63
      %s66 = sphi 0, %s65
      %s80 = sphi 0, %s66
      %s88 = sphi 0, %s90
      %s91 = sphi 0, %s88
      %s92 = sphi 0, %s91
      %s108 = sphi 0, %s92
    $region4: #{sa_layer_forward.1} parent=1 // loop_header_branch
      %18 = sbr.rel (%p16) target = $region8
    $region5: #{sa_layer_forward.1} parent=1 // loop_body
      %s20 = ssub.s32 %s15, 1
      %s21 = ssub.s32 %s15, 2
      %s28 = sadd.s32 1, %s23
      %p29 = scmp.ge.s32.totalorder %s28, 2
      %s30 = scalar_select %p29, 0, %s28
      %s31 = sadd.s32 1, %s22
      %s32 = scalar_select %p29, %s31, %s22
      %p33 = scmp.ge.s32.totalorder %s32, 1
      %s34 = scalar_select %p33, 0, %s32
      %s35 = ssub.s32 %s22, %s34
      %s36 = ssub.s32 %s23, %s30
      %s37 = sor.u32 %s35, %s36
      %p38 = scmp.eq.s32.totalorder %s37, 0
      %s40 = sadd.s32 %s39, 1
      %s41 = scalar_select %p38, %s39, %s40
      %p44 = pneg %p38
      %p45 = scmp.eq.s32.totalorder %s15, 1
      %p46 = por %p44, %p45
      %p47 = scmp.ne.s32.totalorder %s39, %s42
      %p48 = scmp.eq.s32.totalorder %s15, 0
      %p49 = por %p47, %p48
      %p50 = scmp.ne.s32.totalorder %s39, %s42
      %p51 = scmp.eq.s32.totalorder %s20, 1
      %p52 = por %p50, %p51
      %p53 = scmp.ne.s32.totalorder %s42, %s43
      %p54 = scmp.eq.s32.totalorder %s20, 0
      %p55 = por %p53, %p54
      %p56 = scmp.ne.s32.totalorder %s42, %s43
      %p57 = scmp.eq.s32.totalorder %s21, 1
      %p58 = por %p56, %p57
      %p60 = scmp.ne.s32.totalorder %s43, %s59
      %p61 = scmp.eq.s32.totalorder %s21, 0
      %p62 = por %p60, %p61
      %s64 = sadd.s32 %s63, 1
      %p67 = scmp.eq.s32.totalorder %s15, 1
      %p68 = scmp.ne.s32.totalorder %s63, %s65
      %p69 = scmp.eq.s32.totalorder %s15, 0
      %p70 = por %p68, %p69
      %p71 = scmp.ne.s32.totalorder %s63, %s65
      %p72 = scmp.eq.s32.totalorder %s20, 1
      %p73 = por %p71, %p72
      %p74 = scmp.ne.s32.totalorder %s65, %s66
      %p75 = scmp.eq.s32.totalorder %s20, 0
      %p76 = por %p74, %p75
      %p77 = scmp.ne.s32.totalorder %s65, %s66
      %p78 = scmp.eq.s32.totalorder %s21, 1
      %p79 = por %p77, %p78
      %p81 = scmp.ne.s32.totalorder %s66, %s80
      %p82 = scmp.eq.s32.totalorder %s21, 0
      %p83 = por %p81, %p82
      %s84 = ssub.s32 %s22, %s34
      %s85 = ssub.s32 %s23, %s30
      %s86 = sor.u32 %s84, %s85
      %p87 = scmp.eq.s32.totalorder %s86, 0
      %s89 = sadd.s32 %s88, 1
      %s90 = scalar_select %p87, %s88, %s89
      %p93 = pneg %p87
      %p94 = scmp.eq.s32.totalorder %s15, 1
      %p95 = por %p93, %p94
      %p96 = scmp.ne.s32.totalorder %s88, %s91
      %p97 = scmp.eq.s32.totalorder %s15, 0
      %p98 = por %p96, %p97
      %p99 = scmp.ne.s32.totalorder %s88, %s91
      %p100 = scmp.eq.s32.totalorder %s20, 1
      %p101 = por %p99, %p100
      %p102 = scmp.ne.s32.totalorder %s91, %s92
      %p103 = scmp.eq.s32.totalorder %s20, 0
      %p104 = por %p102, %p103
      %p105 = scmp.ne.s32.totalorder %s91, %s92
      %p106 = scmp.eq.s32.totalorder %s21, 1
      %p107 = por %p105, %p106
      %p109 = scmp.ne.s32.totalorder %s92, %s108
      %p110 = scmp.eq.s32.totalorder %s21, 0
      %p111 = por %p109, %p110
      %p112 = scmp.le.s32.totalorder 1, %s15
      %p113 = scmp.lt.s32.totalorder %s15, 3
      %p114 = pnand %p112, %p113
      %p115 = pneg %p114
      // Predicated region
      $region9: #{sa_layer_forward.1} parent=5 // pred_check
        _
      $region10: #{sa_layer_forward.1} parent=5 // pred_check_branch
        %117 = sbr.rel (%p114) target = $region12
      $region11: #{sa_layer_forward.1} parent=5 // pred_region
        %s118 = ssub.s32 %s15, 1
        // Predicated region
        $region13: #{sa_layer_forward.1} parent=11 // pred_check
          %p119 = pneg %p76
        $region14: #{sa_layer_forward.1} parent=11 // pred_check_branch
          %121 = sbr.rel (%p119) target = $region16
        $region15: #{sa_layer_forward.1} parent=11 // pred_region
          %s123 = ssub.s32 256, 256
          %124 = vsyncadd [#allocation6], %s123
          %s125 = sshll.u32 [#allocation5], 4
          %s126 = int_to_ptr.vmem [resolvable:$true] %s125
          %131 = dma.hbm_to_vmem [thread:$0]  %s1, 256, %s126, [#allocation6], 128, 128, 8
        $region16: #{sa_layer_forward.1} parent=11 // pred_fallthru
          _
      $region12: #{sa_layer_forward.1} parent=5 // pred_fallthru
        _
      %p132 = scmp.lt.s32.totalorder %s15, 2
      // Predicated region
      $region17: #{sa_layer_forward.1} parent=5 // pred_check
        %p133 = pneg %p132
      $region18: #{sa_layer_forward.1} parent=5 // pred_check_branch
        %135 = sbr.rel (%p133) target = $region20
      $region19: #{sa_layer_forward.1} parent=5 // pred_region
        // Predicated region
        $region21: #{sa_layer_forward.1} parent=19 // pred_check
          %p136 = pneg %p49
        $region22: #{sa_layer_forward.1} parent=19 // pred_check_branch
          %138 = sbr.rel (%p136) target = $region24
        $region23: #{sa_layer_forward.1} parent=19 // pred_region
          #allocation9 [shape = 'u32[6]{0}', space=smem, size = 0x18, scoped, tag = 'DMA stride descriptor']
          %s139 = sand.u32 %s39, 1
          %s140 = scalar_lea.sflag [#allocation3], %s139
          %s141 = sand.u32 %s39, 1
          %s142 = smul.addr %s141, 64
          %s143 = scalar_lea.vmem [#allocation2], %s142
          %s144 = smul.u32 2, %s22
          %s145 = smul.u32 2, %s23
          %s147 = ssub.s32 1024, 1024
          %148 = vsyncadd %s140, %s147
          %s149 = smul.addr %s145, 2
          %s150 = smul.addr %s144, 8
          %s151 = sadd.s32 %s149, %s150
          %s152 = smul.addr %s151, 128
          %s153 = scalar_lea.hbm %s0, %s152
          %s155 = sshll.u32 1, 14
          %s156 = sxor.u32 4294967295, %s155
          %s158 = sld [smem:[#allocation0]]
          %s159 = sadd.s32 2, %s158
          %s161 = sshll.u32 7, 26
          %s162 = sxor.u32 4294967295, %s161
          %s163 = sand.u32 0, %s162
          %s164 = sshll.u32 %s159, 26
          %s165 = sor.u32 %s163, %s164
          %s166 = sshll.u32 %s143, 4
          %s167 = int_to_ptr.vmem [resolvable:$true] %s166
          %173 = sst [smem:[#allocation9]] 1024
          %s174 = scalar_lea.smem [#allocation9], 1
          %175 = sst [smem:[%s174]] 512
          %s176 = scalar_lea.smem [#allocation9], 2
          %177 = sst [smem:[%s176]] 2
          %s178 = scalar_lea.smem [#allocation9], 3
          %179 = sst [smem:[%s178]] 256
          %s180 = scalar_lea.smem [#allocation9], 4
          %181 = sst [smem:[%s180]] 256
          %s182 = scalar_lea.smem [#allocation9], 5
          %183 = sst [smem:[%s182]] 16
          %185 = dma.general %s153, 1024, %s167, %s140, [#allocation8], [#allocation9], %s165, 0
        $region24: #{sa_layer_forward.1} parent=19 // pred_fallthru
          _
      $region20: #{sa_layer_forward.1} parent=5 // pred_fallthru
        _
      %p186 = scmp.le.s32.totalorder 1, %s15
      %p187 = scmp.lt.s32.totalorder %s15, 3
      %p188 = pnand %p186, %p187
      %p189 = pneg %p188
      // Predicated region
      $region25: #{sa_layer_forward.1} parent=5 // pred_check
        _
      $region26: #{sa_layer_forward.1} parent=5 // pred_check_branch
        %191 = sbr.rel (%p188) target = $region28
      $region27: #{sa_layer_forward.1} parent=5 // pred_region
        %s192 = ssub.s32 %s15, 1
        %s193 = sand.u32 %s42, 1
        %s194 = scalar_lea.sflag [#allocation3], %s193
        %s195 = sand.u32 %s42, 1
        %s196 = smul.addr %s195, 64
        %s197 = scalar_lea.vmem [#allocation2], %s196
        // Predicated region
        $region29: #{sa_layer_forward.1} parent=27 // pred_check
          %p198 = pneg %p55
        $region30: #{sa_layer_forward.1} parent=27 // pred_check_branch
          %200 = sbr.rel (%p198) target = $region32
        $region31: #{sa_layer_forward.1} parent=27 // pred_region
          %201 = dma.done %s194, 1024
        $region32: #{sa_layer_forward.1} parent=27 // pred_fallthru
          _
        // Predicated region
        $region33: #{sa_layer_forward.1} parent=27 // pred_check
          %p202 = pneg %p76
        $region34: #{sa_layer_forward.1} parent=27 // pred_check_branch
          %204 = sbr.rel (%p202) target = $region36
        $region35: #{sa_layer_forward.1} parent=27 // pred_region
          %205 = dma.done [#allocation6], 256
        $region36: #{sa_layer_forward.1} parent=27 // pred_fallthru
          _
        %s206 = sand.u32 %s42, 1
        %s207 = scalar_lea.sflag [#allocation3], %s206
        %s208 = sand.u32 %s42, 1
        %s209 = smul.addr %s208, 64
        %s210 = scalar_lea.vmem [#allocation2], %s209
        %p211 = pneg %p55
        %p212 = pneg %p52
        %p213 = pneg %p76
        %p214 = pneg %p73
        %p215 = pneg %p104
        %p216 = pneg %p101
        %s217 = sand.u32 %s91, 1
        %s218 = scalar_lea.sflag [#allocation4], %s217
        %s219 = sand.u32 %s91, 1
        %s220 = smul.addr %s219, 64
        %s221 = scalar_lea.vmem [#allocation7], %s220
        %s222 = smul.u32 2, %s24
        %s223 = smul.u32 2, %s25
        %s224 = smul.u32 2, %s24
        %s225 = smul.u32 2, %s25
        %v226 = vld [vmem:[%s197] sm:$0xff]
        %v227 = vld [vmem:[%s197 + $0x8] sm:$0xff]
        %v228 = vld [vmem:[%s197 + $0x10] sm:$0xff]
        %v229 = vld [vmem:[%s197 + $0x18] sm:$0xff]
        %v230 = vld [vmem:[%s197 + $0x20] sm:$0xff]
        %v231 = vld [vmem:[%s197 + $0x28] sm:$0xff]
        %v232 = vld [vmem:[%s197 + $0x30] sm:$0xff]
        %v233 = vld [vmem:[%s197 + $0x38] sm:$0xff]
        %v234 = vld [vmem:[#allocation5] sm:$0xff]
        %v235 = vld [vmem:[#allocation5 + $0x8] sm:$0xff]
        %v236 = vadd.f32 %v226, %v227
        %237 = vadd.xlane.f32.xlu0 %v236
        %v238 = vpop.xlane.xlu0 %237
        %v239 = vadd.f32 %v228, %v229
        %240 = vadd.xlane.f32.xlu0 %v239
        %v241 = vpop.xlane.xlu0 %240
        %v242 = vadd.f32 %v230, %v231
        %243 = vadd.xlane.f32.xlu0 %v242
        %v244 = vpop.xlane.xlu0 %243
        %v245 = vadd.f32 %v232, %v233
        %246 = vadd.xlane.f32.xlu0 %v245
        %v247 = vpop.xlane.xlu0 %246
        %v248 = vmul.f32 %v238, 0.00390625
        %v249 = vmul.f32 %v241, 0.00390625
        %v250 = vmul.f32 %v244, 0.00390625
        %v251 = vmul.f32 %v247, 0.00390625
        %v252 = vsub.f32 %v226, %v248
        %v253 = vsub.f32 %v227, %v248
        %v254 = vsub.f32 %v228, %v249
        %v255 = vsub.f32 %v229, %v249
        %v256 = vsub.f32 %v230, %v250
        %v257 = vsub.f32 %v231, %v250
        %v258 = vsub.f32 %v232, %v251
        %v259 = vsub.f32 %v233, %v251
        %v260 = vmul.f32 %v252, %v252
        %v261 = vmul.f32 %v253, %v253
        %v262 = vmul.f32 %v254, %v254
        %v263 = vmul.f32 %v255, %v255
        %v264 = vmul.f32 %v256, %v256
        %v265 = vmul.f32 %v257, %v257
        %v266 = vmul.f32 %v258, %v258
        %v267 = vmul.f32 %v259, %v259
        %v268 = vadd.f32 %v260, %v261
        %269 = vadd.xlane.f32.xlu0 %v268
        %v270 = vpop.xlane.xlu0 %269
        %v271 = vadd.f32 %v262, %v263
        %272 = vadd.xlane.f32.xlu0 %v271
        %v273 = vpop.xlane.xlu0 %272
        %v274 = vadd.f32 %v264, %v265
        %275 = vadd.xlane.f32.xlu0 %v274
        %v276 = vpop.xlane.xlu0 %275
        %v277 = vadd.f32 %v266, %v267
        %278 = vadd.xlane.f32.xlu0 %v277
        %v279 = vpop.xlane.xlu0 %278
        %v280 = vmul.f32 %v270, 0.00390625
        %v281 = vmul.f32 %v273, 0.00390625
        %v282 = vmul.f32 %v276, 0.00390625
        %v283 = vmul.f32 %v279, 0.00390625
        %v284 = vadd.f32 %v280, 1e-05
        %v285 = vadd.f32 %v281, 1e-05
        %v286 = vadd.f32 %v282, 1e-05
        %v287 = vadd.f32 %v283, 1e-05
        %v288 = vrsqrt.pop %v284
        %v289 = vrsqrt.pop %v285
        %v290 = vrsqrt.pop %v286
        %v291 = vrsqrt.pop %v287
        %v292 = vmul.f32 %v234, %v288
        %v293 = vmul.f32 %v235, %v289
        %v294 = vmul.f32 %v234, %v290
        %v295 = vmul.f32 %v235, %v291
        %300 = vrot.lane.b32.xlu0 %v292, 1
        %v301 = vpop.permute.xlu0 %300
        %302 = vrot.lane.b32.xlu0 %v293, 1
        %v303 = vpop.permute.xlu0 %302
        %304 = vrot.lane.b32.xlu0 %v294, 1
        %v305 = vpop.permute.xlu0 %304
        %306 = vrot.lane.b32.xlu0 %v295, 1
        %v307 = vpop.permute.xlu0 %306
        %v312 = vsub.f32 %v234, %v301
        %v313 = vsub.f32 %v235, %v303
        %v314 = vsub.f32 %v234, %v305
        %v315 = vsub.f32 %v235, %v307
        %v316 = vmul.f32 %v312, %v248
        %v317 = vmul.f32 %v313, %v249
        %v318 = vmul.f32 %v314, %v250
        %v319 = vmul.f32 %v315, %v251
        %322 = vrot.lane.b32.xlu0 %v234, 127
        %v323 = vpop.permute.xlu0 %322
        %324 = vrot.lane.b32.xlu0 %v235, 127
        %v325 = vpop.permute.xlu0 %324
        %v328 = vadd.f32 %v316, %v323
        %v329 = vadd.f32 %v317, %v325
        %v330 = vadd.f32 %v318, %v323
        %v331 = vadd.f32 %v319, %v325
        %332 = vset.pattern.permute.xlu0 0
        %333 = vperm.xlu0 %332, %v292
        %v334 = vpop.permute.xlu0 %333
        %336 = vset.pattern.permute.xlu0 0
        %337 = vperm.xlu0 %336, %v293
        %v338 = vpop.permute.xlu0 %337
        %340 = vset.pattern.permute.xlu0 0
        %341 = vperm.xlu0 %340, %v294
        %v342 = vpop.permute.xlu0 %341
        %344 = vset.pattern.permute.xlu0 0
        %345 = vperm.xlu0 %344, %v295
        %v346 = vpop.permute.xlu0 %345
        %v348 = vmul.f32 %v334, %v226
        %v349 = vmul.f32 %v334, %v227
        %v350 = vmul.f32 %v338, %v228
        %v351 = vmul.f32 %v338, %v229
        %v352 = vmul.f32 %v342, %v230
        %v353 = vmul.f32 %v342, %v231
        %v354 = vmul.f32 %v346, %v232
        %v355 = vmul.f32 %v346, %v233
        %357 = vset.pattern.permute.xlu0 1
        %358 = vperm.xlu0 %357, %v328
        %v359 = vpop.permute.xlu0 %358
        %362 = vset.pattern.permute.xlu0 1
        %363 = vperm.xlu0 %362, %v329
        %v364 = vpop.permute.xlu0 %363
        %367 = vset.pattern.permute.xlu0 1
        %368 = vperm.xlu0 %367, %v330
        %v369 = vpop.permute.xlu0 %368
        %372 = vset.pattern.permute.xlu0 1
        %373 = vperm.xlu0 %372, %v331
        %v374 = vpop.permute.xlu0 %373
        %v376 = vadd.f32 %v348, %v359
        %v377 = vadd.f32 %v349, %v359
        %v378 = vadd.f32 %v350, %v364
        %v379 = vadd.f32 %v351, %v364
        %v380 = vadd.f32 %v352, %v369
        %v381 = vadd.f32 %v353, %v369
        %v382 = vadd.f32 %v354, %v374
        %v383 = vadd.f32 %v355, %v374
        %v384 = vmul.f32 %v376, 0.5
        %v385 = vmul.f32 %v377, 0.5
        %v386 = vmul.f32 %v378, 0.5
        %v387 = vmul.f32 %v379, 0.5
        %v388 = vmul.f32 %v380, 0.5
        %v389 = vmul.f32 %v381, 0.5
        %v390 = vmul.f32 %v382, 0.5
        %v391 = vmul.f32 %v383, 0.5
        %v392 = vtanh.pop %v384
        %v393 = vtanh.pop %v385
        %v394 = vtanh.pop %v386
        %v395 = vtanh.pop %v387
        %v396 = vtanh.pop %v388
        %v397 = vtanh.pop %v389
        %v398 = vtanh.pop %v390
        %v399 = vtanh.pop %v391
        %v400 = vmul.f32 %v392, 0.5
        %v401 = vmul.f32 %v393, 0.5
        %v402 = vmul.f32 %v394, 0.5
        %v403 = vmul.f32 %v395, 0.5
        %v404 = vmul.f32 %v396, 0.5
        %v405 = vmul.f32 %v397, 0.5
        %v406 = vmul.f32 %v398, 0.5
        %v407 = vmul.f32 %v399, 0.5
        %v408 = vadd.f32 %v400, 0.5
        %v409 = vadd.f32 %v401, 0.5
        %v410 = vadd.f32 %v402, 0.5
        %v411 = vadd.f32 %v403, 0.5
        %v412 = vadd.f32 %v404, 0.5
        %v413 = vadd.f32 %v405, 0.5
        %v414 = vadd.f32 %v406, 0.5
        %v415 = vadd.f32 %v407, 0.5
        %v416 = vmul.f32 %v226, %v408
        %v417 = vmul.f32 %v227, %v409
        %v418 = vmul.f32 %v228, %v410
        %v419 = vmul.f32 %v229, %v411
        %v420 = vmul.f32 %v230, %v412
        %v421 = vmul.f32 %v231, %v413
        %v422 = vmul.f32 %v232, %v414
        %v423 = vmul.f32 %v233, %v415
        %424 = vst [vmem:[%s221] sm:$0xff] %v416
        %425 = vst [vmem:[%s221 + $0x8] sm:$0xff] %v417
        %426 = vst [vmem:[%s221 + $0x10] sm:$0xff] %v418
        %427 = vst [vmem:[%s221 + $0x18] sm:$0xff] %v419
        %428 = vst [vmem:[%s221 + $0x20] sm:$0xff] %v420
        %429 = vst [vmem:[%s221 + $0x28] sm:$0xff] %v421
        %430 = vst [vmem:[%s221 + $0x30] sm:$0xff] %v422
        %431 = vst [vmem:[%s221 + $0x38] sm:$0xff] %v423
        %s432 = sand.u32 %s91, 1
        %s433 = scalar_lea.sflag [#allocation4], %s432
        %s434 = sand.u32 %s91, 1
        %s435 = smul.addr %s434, 64
        %s436 = scalar_lea.vmem [#allocation7], %s435
        // Predicated region
        $region37: #{sa_layer_forward.1} parent=27 // pred_check
          %p437 = pneg %p101
        $region38: #{sa_layer_forward.1} parent=27 // pred_check_branch
          %439 = sbr.rel (%p437) target = $region40
        $region39: #{sa_layer_forward.1} parent=27 // pred_region
          %s440 = smul.u32 2, %s24
          %s441 = smul.u32 2, %s25
          %s443 = ssub.s32 1024, 1024
          %444 = vsyncadd %s433, %s443
          %s445 = smul.addr %s440, 8
          %s446 = sadd.s32 %s441, %s445
          %s447 = smul.addr %s446, 128
          %s448 = scalar_lea.hbm %s2, %s447
          %s449 = sshll.u32 %s436, 4
          %s450 = int_to_ptr.vmem [resolvable:$true] %s449
          %455 = dma.vmem_to_hbm [thread:$0]  %s450, 1024, %s448, %s433, 256, 512, 16
        $region40: #{sa_layer_forward.1} parent=27 // pred_fallthru
          _
      $region28: #{sa_layer_forward.1} parent=5 // pred_fallthru
        _
      %p456 = scmp.le.s32.totalorder 2, %s15
      // Predicated region
      $region41: #{sa_layer_forward.1} parent=5 // pred_check
        %p457 = pneg %p456
      $region42: #{sa_layer_forward.1} parent=5 // pred_check_branch
        %459 = sbr.rel (%p457) target = $region44
      $region43: #{sa_layer_forward.1} parent=5 // pred_region
        %s460 = ssub.s32 %s15, 2
        // Predicated region
        $region45: #{sa_layer_forward.1} parent=43 // pred_check
          %p461 = pneg %p107
        $region46: #{sa_layer_forward.1} parent=43 // pred_check_branch
          %463 = sbr.rel (%p461) target = $region48
        $region47: #{sa_layer_forward.1} parent=43 // pred_region
          %s464 = sand.u32 %s92, 1
          %s465 = scalar_lea.sflag [#allocation4], %s464
          %s466 = sand.u32 %s92, 1
          %s467 = smul.addr %s466, 64
          %s468 = scalar_lea.vmem [#allocation7], %s467
          %469 = dma.done %s465, 1024
        $region48: #{sa_layer_forward.1} parent=43 // pred_fallthru
          _
      $region44: #{sa_layer_forward.1} parent=5 // pred_fallthru
        _
    $region6: #{sa_layer_forward.1} parent=1 // loop_footer
      %s19 = sadd.s32 1, %s15
    $region7: #{sa_layer_forward.1} parent=1 // loop_footer_branch
      %14 = sbr.rel target = $region3
    $region8: #{sa_layer_forward.1} parent=1 // loop_exit
      _
    %470 = vsyncpa [#allocation3], 1
    %s471 = scalar_lea.sflag [#allocation3], 1
    %472 = vsyncpa %s471, 1
    %473 = vsyncpa [#allocation6], 1
    %474 = vsyncpa [#allocation4], 1
    %s475 = scalar_lea.sflag [#allocation4], 1
    %476 = vsyncpa %s475, 1

</llo_original>
